<compile_context>
chip_gen: v6e
topology: v6e:2x2x1
jax: 0.10.0
libtpu: 0.0.40
codegen_flags: <defaults>
</compile_context>

<pallas_src>
import functools

import jax
import jax.numpy as jnp
from jax import lax
from jax.experimental import pallas as pl
from jax.experimental.pallas import tpu as pltpu


def _round_up(n, m):
    return ((n + m - 1) // m) * m


def _encoder_kernel(n_layers, tb, b_real, eps, matmul_dtype, *refs):
    """Fused (Linear+ReLU)*n + whole-batch BatchNorm for one batch tile.

    refs = (x_ref, w0, b0, ..., w_{n-1}, b_{n-1}, out_ref)
      out_ref : (b_pad, Fp) resident output block (constant index map across
                the "arbitrary" batch-tile axis).  Each step stashes its
                pre-BN tile; the last step normalizes the whole slab in VMEM.
    """
    x_ref = refs[0]
    out_ref = refs[-1]
    param_refs = refs[1:-1]

    i = pl.program_id(0)
    nb = pl.num_programs(0)
    b_pad = out_ref.shape[0]

    # ---- fused MLP for this batch tile (bf16 MXU operands, f32 accum) ------
    h = x_ref[...]
    for l in range(n_layers):
        w = param_refs[2 * l][...]                        # matmul_dtype
        b = param_refs[2 * l + 1][...]                    # f32, (1, F_out)
        a = h if h.dtype == jnp.dtype(matmul_dtype) else h.astype(matmul_dtype)
        h = jnp.dot(a, w, preferred_element_type=jnp.float32) + b
        h = jnp.maximum(h, 0.0)                           # ReLU
    # Dropout (eval / inference mode): identity.

    # Stash pre-BN activations into the VMEM-resident output slab.
    start = pl.multiple_of(i * tb, tb)
    out_ref[pl.ds(start, tb), :] = h

    # ---- last step: whole-batch BatchNorm (affine=False) in place ----------
    @pl.when(i == nb - 1)
    def _():
        h_all = out_ref[...]                              # (b_pad, Fp) f32
        if b_pad != b_real:
            row = lax.broadcasted_iota(jnp.int32, h_all.shape, 0)
            valid = row < b_real
            h_sum_src = jnp.where(valid, h_all, 0.0)
        else:
            valid = None
            h_sum_src = h_all
        inv_n = jnp.float32(1.0 / b_real)
        mean = jnp.sum(h_sum_src, axis=0, keepdims=True) * inv_n   # (1, Fp)
        d = h_all - mean
        dsq = d * d if valid is None else jnp.where(valid, d * d, 0.0)
        var = jnp.sum(dsq, axis=0, keepdims=True) * inv_n          # biased
        out_ref[...] = d * lax.rsqrt(var + eps)


def encoder_forward(x, weights, biases, eps=1e-5, batch_tile=256,
                    matmul_dtype=jnp.bfloat16):
    """x: [B, input_size]; weights[l]: [f_in, f_out]; biases[l]: [1, f_out]."""
    B, in_dim = x.shape
    n_layers = len(weights)
    out_dim = weights[-1].shape[1]
    assert weights[0].shape[0] == in_dim

    # Only the final feature dim is lane-padded (unmasked HBM output store);
    # contraction dims keep their real size (full-extent blocks are legal and
    # the MXU handles K < 128 internally).
    fp_out = _round_up(out_dim, 128)

    # Batch tiling: sublane-aligned tiles; 256 rows fills the v6e/v7x MXU.
    tb = min(batch_tile, _round_up(B, 8))
    b_pad = _round_up(B, tb)
    nb = b_pad // tb

    x_dtype = jnp.dtype(matmul_dtype)
    if b_pad == B:
        xp = x.astype(x_dtype)
    else:
        xp = jnp.zeros((b_pad, in_dim), x_dtype).at[:B].set(x.astype(x_dtype))

    args = [xp]
    in_specs = [pl.BlockSpec((tb, in_dim), lambda i: (i, 0))]
    for l, (w, b) in enumerate(zip(weights, biases)):
        f_in, f_out = w.shape
        if l == n_layers - 1 and f_out != fp_out:
            wp = jnp.zeros((f_in, fp_out), matmul_dtype)
            wp = wp.at[:, :f_out].set(w.astype(matmul_dtype))
            bp = jnp.zeros((1, fp_out), jnp.float32)
            bp = bp.at[:, :f_out].set(b.astype(jnp.float32))
        else:
            wp = w.astype(matmul_dtype)
            bp = b.astype(jnp.float32)
        args += [wp, bp]
        # Constant index maps: the same weight/bias block is used on every
        # batch-tile step, so it stays resident (no re-DMA between steps).
        in_specs += [pl.BlockSpec(wp.shape, lambda i: (0, 0)),
                     pl.BlockSpec(bp.shape, lambda i: (0, 0))]

    kernel = functools.partial(
        _encoder_kernel, n_layers, tb, B, eps, matmul_dtype)
    y = pl.pallas_call(
        kernel,
        out_shape=jax.ShapeDtypeStruct((b_pad, fp_out), jnp.float32),
        grid_spec=pltpu.PrefetchScalarGridSpec(
            num_scalar_prefetch=0,
            grid=(nb,),
            in_specs=in_specs,
            # Constant index map -> whole pre-BN slab stays resident in VMEM
            # across batch steps; written back to HBM exactly once.
            out_specs=pl.BlockSpec((b_pad, fp_out), lambda i: (0, 0))),
        compiler_params=pltpu.CompilerParams(
            dimension_semantics=("arbitrary",)),
    )(*args)

    # Strip batch and lane padding.
    return y[:B, :out_dim]


def encoder_reference(x, weights, biases, eps=1e-5, matmul_dtype=jnp.bfloat16):
    """Pure-JAX reference with the same bf16-operand / f32-accum recipe."""
    h = x.astype(jnp.float32)
    for w, b in zip(weights, biases):
        h = jnp.dot(h.astype(matmul_dtype), w.astype(matmul_dtype),
                    preferred_element_type=jnp.float32) + b.astype(jnp.float32)
        h = jnp.maximum(h, 0.0)
    mean = jnp.mean(h, axis=0, keepdims=True)
    var = jnp.mean((h - mean) ** 2, axis=0, keepdims=True)
    return (h - mean) * lax.rsqrt(var + eps)


def init_encoder_params(key, input_size, output_size, hidden_sizes):
    """Deterministic synthetic parameters (shapes match the nn.Module)."""
    dims = [input_size] + list(hidden_sizes) + [output_size]
    weights, biases = [], []
    for f_in, f_out in zip(dims[:-1], dims[1:]):
        key, kw, kb = jax.random.split(key, 3)
        bound = 1.0 / jnp.sqrt(jnp.float32(f_in))
        w = jax.random.uniform(kw, (f_in, f_out), jnp.float32, -bound, bound)
        b = jax.random.uniform(kb, (1, f_out), jnp.float32, -bound, bound)
        weights.append(w)
        biases.append(b)
    return weights, biases


if __name__ == "__main__":
    # Shapes consistent with the module (bag-of-words vocab -> topics).
    # B=256 gives a full 256-row MXU tile; feature dims stay the module's
    # small 64 -> [48, 32] -> 16.
    B = 256
    input_size, hidden_sizes, output_size = 64, [48, 32], 16

    key = jax.random.PRNGKey(0)
    key, kx = jax.random.split(key)
    x = jax.random.uniform(kx, (B, input_size), jnp.float32)

    weights, biases = init_encoder_params(key, input_size, output_size,
                                          hidden_sizes)

    out = encoder_forward(x, weights, biases)
    jax.block_until_ready(out)

    assert out.shape == (B, output_size), out.shape
    assert bool(jnp.all(jnp.isfinite(out)))

    ref = encoder_reference(x, weights, biases)
    max_err = float(jnp.max(jnp.abs(out - ref)))
    assert max_err < 5e-2, f"max abs err vs reference: {max_err}"
    print("KERNEL_OK")
</pallas_src>

<mosaic_0001>
module attributes {stable_mosaic.version = 11 : i64} {
  func.func @_encoder_kernel(%arg0: i32, %arg1: memref<256x64xbf16, #tpu.memory_space<vmem>>, %arg2: memref<64x48xbf16, #tpu.memory_space<vmem>>, %arg3: memref<1x48xf32, #tpu.memory_space<vmem>>, %arg4: memref<48x32xbf16, #tpu.memory_space<vmem>>, %arg5: memref<1x32xf32, #tpu.memory_space<vmem>>, %arg6: memref<32x128xbf16, #tpu.memory_space<vmem>>, %arg7: memref<1x128xf32, #tpu.memory_space<vmem>>, %arg8: memref<256x128xf32, #tpu.memory_space<vmem>>) attributes {dimension_semantics = [#tpu.dimension_semantics<arbitrary>], iteration_bounds = array<i64: 1>, scalar_prefetch = 0 : i64, scratch_operands = 0 : i64, tpu.core_type = #tpu.core_type<tc>, window_params = [{transform_indices = @transform_0, window_bounds = array<i64: 256, 64>}, {pipeline_mode = #tpu.pipeline_mode<synchronous>, transform_indices = @transform_1, window_bounds = array<i64: 64, 48>}, {pipeline_mode = #tpu.pipeline_mode<synchronous>, transform_indices = @transform_2, window_bounds = array<i64: 1, 48>}, {pipeline_mode = #tpu.pipeline_mode<synchronous>, transform_indices = @transform_3, window_bounds = array<i64: 48, 32>}, {pipeline_mode = #tpu.pipeline_mode<synchronous>, transform_indices = @transform_4, window_bounds = array<i64: 1, 32>}, {pipeline_mode = #tpu.pipeline_mode<synchronous>, transform_indices = @transform_5, window_bounds = array<i64: 32, 128>}, {pipeline_mode = #tpu.pipeline_mode<synchronous>, transform_indices = @transform_6, window_bounds = array<i64: 1, 128>}, {pipeline_mode = #tpu.pipeline_mode<synchronous>, transform_indices = @transform_7, window_bounds = array<i64: 256, 128>}]} {
    %c0 = arith.constant 0 : index
    %c0_0 = arith.constant 0 : index
    %0 = vector.load %arg1[%c0, %c0_0] : memref<256x64xbf16, #tpu.memory_space<vmem>>, vector<256x64xbf16>
    %c0_1 = arith.constant 0 : index
    %c0_2 = arith.constant 0 : index
    %1 = vector.load %arg2[%c0_1, %c0_2] : memref<64x48xbf16, #tpu.memory_space<vmem>>, vector<64x48xbf16>
    %c0_3 = arith.constant 0 : index
    %c0_4 = arith.constant 0 : index
    %2 = vector.load %arg3[%c0_3, %c0_4] : memref<1x48xf32, #tpu.memory_space<vmem>>, vector<1x48xf32>
    %cst = arith.constant dense<0.000000e+00> : vector<256x48xf32>
    %3 = tpu.matmul %0, %1, %cst {dimension_numbers = #tpu.dot_dimension_numbers<[1], [0], [0], [1], [0, 0, 1, 1], [], []>} : vector<256x64xbf16>, vector<64x48xbf16>, vector<256x48xf32> -> vector<256x48xf32>
    %4 = vector.broadcast %2 : vector<1x48xf32> to vector<256x48xf32>
    %5 = arith.addf %3, %4 : vector<256x48xf32>
    %cst_5 = arith.constant 0.000000e+00 : f32
    %6 = vector.broadcast %cst_5 : f32 to vector<256x48xf32>
    %7 = arith.maximumf %5, %6 : vector<256x48xf32>
    %c0_6 = arith.constant 0 : index
    %c0_7 = arith.constant 0 : index
    %8 = vector.load %arg4[%c0_6, %c0_7] : memref<48x32xbf16, #tpu.memory_space<vmem>>, vector<48x32xbf16>
    %c0_8 = arith.constant 0 : index
    %c0_9 = arith.constant 0 : index
    %9 = vector.load %arg5[%c0_8, %c0_9] : memref<1x32xf32, #tpu.memory_space<vmem>>, vector<1x32xf32>
    %10 = arith.truncf %7 : vector<256x48xf32> to vector<256x48xbf16>
    %cst_10 = arith.constant dense<0.000000e+00> : vector<256x32xf32>
    %11 = tpu.matmul %10, %8, %cst_10 {dimension_numbers = #tpu.dot_dimension_numbers<[1], [0], [0], [1], [0, 0, 1, 1], [], []>} : vector<256x48xbf16>, vector<48x32xbf16>, vector<256x32xf32> -> vector<256x32xf32>
    %12 = vector.broadcast %9 : vector<1x32xf32> to vector<256x32xf32>
    %13 = arith.addf %11, %12 : vector<256x32xf32>
    %cst_11 = arith.constant 0.000000e+00 : f32
    %14 = vector.broadcast %cst_11 : f32 to vector<256x32xf32>
    %15 = arith.maximumf %13, %14 : vector<256x32xf32>
    %c0_12 = arith.constant 0 : index
    %c0_13 = arith.constant 0 : index
    %16 = vector.load %arg6[%c0_12, %c0_13] : memref<32x128xbf16, #tpu.memory_space<vmem>>, vector<32x128xbf16>
    %c0_14 = arith.constant 0 : index
    %c0_15 = arith.constant 0 : index
    %17 = vector.load %arg7[%c0_14, %c0_15] : memref<1x128xf32, #tpu.memory_space<vmem>>, vector<1x128xf32>
    %18 = arith.truncf %15 : vector<256x32xf32> to vector<256x32xbf16>
    %cst_16 = arith.constant dense<0.000000e+00> : vector<256x128xf32>
    %19 = tpu.matmul %18, %16, %cst_16 {dimension_numbers = #tpu.dot_dimension_numbers<[1], [0], [0], [1], [0, 0, 1, 1], [], []>} : vector<256x32xbf16>, vector<32x128xbf16>, vector<256x128xf32> -> vector<256x128xf32>
    %20 = vector.broadcast %17 : vector<1x128xf32> to vector<256x128xf32>
    %21 = arith.addf %19, %20 : vector<256x128xf32>
    %cst_17 = arith.constant 0.000000e+00 : f32
    %22 = vector.broadcast %cst_17 : f32 to vector<256x128xf32>
    %23 = arith.maximumf %21, %22 : vector<256x128xf32>
    %c256_i32 = arith.constant 256 : i32
    %24 = arith.muli %arg0, %c256_i32 : i32
    %25 = tpu.assume_multiple %24, 256 : i32
    %26 = arith.index_cast %25 : i32 to index
    %c0_18 = arith.constant 0 : index
    %27 = vector.load %arg8[%26, %c0_18] : memref<256x128xf32, #tpu.memory_space<vmem>>, vector<256x128xf32>
    tpu.vector_store %arg8[%26, %c0_18], %23 {strides = array<i32>} : memref<256x128xf32, #tpu.memory_space<vmem>>, vector<256x128xf32>,
    %c0_i32 = arith.constant 0 : i32
    %28 = arith.cmpi eq, %arg0, %c0_i32 : i32
    %29 = arith.extui %28 : i1 to i32
    %c0_i32_19 = arith.constant 0 : i32
    %30 = arith.cmpi ne, %29, %c0_i32_19 : i32
    scf.if %30 {
      %c0_20 = arith.constant 0 : index
      %c0_21 = arith.constant 0 : index
      %31 = vector.load %arg8[%c0_20, %c0_21] : memref<256x128xf32, #tpu.memory_space<vmem>>, vector<256x128xf32>
      %cst_22 = arith.constant dense<0.000000e+00> : vector<128xf32>
      %32 = vector.multi_reduction <add>, %31, %cst_22 [0] : vector<256x128xf32> to vector<128xf32>
      %33 = vector.shape_cast %32 : vector<128xf32> to vector<1x128xf32>
      %cst_23 = arith.constant 3.906250e-03 : f32
      %34 = vector.broadcast %cst_23 : f32 to vector<1x128xf32>
      %35 = arith.mulf %33, %34 : vector<1x128xf32>
      %36 = vector.broadcast %35 : vector<1x128xf32> to vector<256x128xf32>
      %37 = arith.subf %31, %36 : vector<256x128xf32>
      %38 = arith.mulf %37, %37 : vector<256x128xf32>
      %cst_24 = arith.constant dense<0.000000e+00> : vector<128xf32>
      %39 = vector.multi_reduction <add>, %38, %cst_24 [0] : vector<256x128xf32> to vector<128xf32>
      %40 = vector.shape_cast %39 : vector<128xf32> to vector<1x128xf32>
      %cst_25 = arith.constant 3.906250e-03 : f32
      %41 = vector.broadcast %cst_25 : f32 to vector<1x128xf32>
      %42 = arith.mulf %40, %41 : vector<1x128xf32>
      %cst_26 = arith.constant 9.99999974E-6 : f32
      %43 = vector.broadcast %cst_26 : f32 to vector<1x128xf32>
      %44 = arith.addf %42, %43 : vector<1x128xf32>
      %45 = math.rsqrt %44 : vector<1x128xf32>
      %46 = vector.broadcast %45 : vector<1x128xf32> to vector<256x128xf32>
      %47 = arith.mulf %37, %46 : vector<256x128xf32>
      %c0_27 = arith.constant 0 : index
      %c0_28 = arith.constant 0 : index
      %48 = vector.load %arg8[%c0_27, %c0_28] : memref<256x128xf32, #tpu.memory_space<vmem>>, vector<256x128xf32>
      tpu.vector_store %arg8[%c0_27, %c0_28], %47 {strides = array<i32>} : memref<256x128xf32, #tpu.memory_space<vmem>>, vector<256x128xf32>,
    } else {
    }
    return
  }
  func.func @transform_0(%arg0: i32) -> (i32, i32) {
    %c0_i32 = arith.constant 0 : i32
    %c0_i32_0 = arith.constant 0 : i32
    return %arg0, %c0_i32 : i32, i32
  }
  func.func @transform_1(%arg0: i32) -> (i32, i32) {
    %c0_i32 = arith.constant 0 : i32
    %c0_i32_0 = arith.constant 0 : i32
    %c0_i32_1 = arith.constant 0 : i32
    return %c0_i32, %c0_i32_0 : i32, i32
  }
  func.func @transform_2(%arg0: i32) -> (i32, i32) {
    %c0_i32 = arith.constant 0 : i32
    %c0_i32_0 = arith.constant 0 : i32
    %c0_i32_1 = arith.constant 0 : i32
    return %c0_i32, %c0_i32_0 : i32, i32
  }
  func.func @transform_3(%arg0: i32) -> (i32, i32) {
    %c0_i32 = arith.constant 0 : i32
    %c0_i32_0 = arith.constant 0 : i32
    %c0_i32_1 = arith.constant 0 : i32
    return %c0_i32, %c0_i32_0 : i32, i32
  }
  func.func @transform_4(%arg0: i32) -> (i32, i32) {
    %c0_i32 = arith.constant 0 : i32
    %c0_i32_0 = arith.constant 0 : i32
    %c0_i32_1 = arith.constant 0 : i32
    return %c0_i32, %c0_i32_0 : i32, i32
  }
  func.func @transform_5(%arg0: i32) -> (i32, i32) {
    %c0_i32 = arith.constant 0 : i32
    %c0_i32_0 = arith.constant 0 : i32
    %c0_i32_1 = arith.constant 0 : i32
    return %c0_i32, %c0_i32_0 : i32, i32
  }
  func.func @transform_6(%arg0: i32) -> (i32, i32) {
    %c0_i32 = arith.constant 0 : i32
    %c0_i32_0 = arith.constant 0 : i32
    %c0_i32_1 = arith.constant 0 : i32
    return %c0_i32, %c0_i32_0 : i32, i32
  }
  func.func @transform_7(%arg0: i32) -> (i32, i32) {
    %c0_i32 = arith.constant 0 : i32
    %c0_i32_0 = arith.constant 0 : i32
    %c0_i32_1 = arith.constant 0 : i32
    return %c0_i32, %c0_i32_0 : i32, i32
  }
}

</mosaic_0001>

<llo_original>
// kernel: tpu_custom_call.1
$region0: #{tpu_custom_call.1}
  #allocation0 [shape = 'u32[]', space=smem, size = 0x4, offset = 0x4, fixed_abs, tag = 'smem constant byte address 0x4 - core index']
  #allocation1 [shape = 'u32[144,128]{1,0:T(1,128)}', space=vmem, size = 0x12000, scoped, tag = 'internal scratch']
  %s0 = inlined_call_operand.vmem [shape: bf16[256,64], index: 0, kind: input, shape index: {}]
  %s1 = inlined_call_operand.vmem [shape: bf16[64,48], index: 1, kind: input, shape index: {}]
  %s2 = inlined_call_operand.vmem [shape: f32[1,48], index: 2, kind: input, shape index: {}]
  %s3 = inlined_call_operand.vmem [shape: bf16[48,32], index: 3, kind: input, shape index: {}]
  %s4 = inlined_call_operand.vmem [shape: f32[1,32], index: 4, kind: input, shape index: {}]
  %s5 = inlined_call_operand.vmem [shape: bf16[32,128], index: 5, kind: input, shape index: {}]
  %s6 = inlined_call_operand.vmem [shape: f32[1,128], index: 6, kind: input, shape index: {}]
  %s7 = inlined_call_operand.hbm [shape: f32[256,128], index: 7, kind: output, shape index: {}]
  %s8 = sld [smem:[#allocation0]]
  $region42: #{tpu_custom_call.1} parent=0
    _
  %s10 = ssub.s32 1, %s8
  %s11 = scalar_select 0, %s10, %s8
  $region1: #{tpu_custom_call.1} parent=0
    #allocation2 [shape = 'u8[131072]{0}', space=vmem, size = 0x20000, scoped, tag = 'output window, operand 0, single buffered']
    #allocation3 [shape = 's32[1]{0}', space=sflag, size = 0x4, scoped, tag = 'scoped memory for tpu_custom_call.1']
    %12 = vsyncpa [#allocation3], 0
    // Predicated region
    $region2: #{tpu_custom_call.1} parent=1 // pred_check
      _
    $region3: #{tpu_custom_call.1} parent=1 // pred_check_branch
      %14 = sbr.rel (0) target = $region5
    $region4: #{tpu_custom_call.1} parent=1 // pred_region
      _
    $region5: #{tpu_custom_call.1} parent=1 // pred_fallthru
      _
    // Predicated region
    $region6: #{tpu_custom_call.1} parent=1 // pred_check
      _
    $region7: #{tpu_custom_call.1} parent=1 // pred_check_branch
      %16 = sbr.rel (0) target = $region9
    $region8: #{tpu_custom_call.1} parent=1 // pred_region
      _
    $region9: #{tpu_custom_call.1} parent=1 // pred_fallthru
      _
    // Predicated region
    $region10: #{tpu_custom_call.1} parent=1 // pred_check
      _
    $region11: #{tpu_custom_call.1} parent=1 // pred_check_branch
      %18 = sbr.rel (0) target = $region13
    $region12: #{tpu_custom_call.1} parent=1 // pred_region
      _
    $region13: #{tpu_custom_call.1} parent=1 // pred_fallthru
      _
    // Predicated region
    $region14: #{tpu_custom_call.1} parent=1 // pred_check
      _
    $region15: #{tpu_custom_call.1} parent=1 // pred_check_branch
      %20 = sbr.rel (0) target = $region17
    $region16: #{tpu_custom_call.1} parent=1 // pred_region
      _
    $region17: #{tpu_custom_call.1} parent=1 // pred_fallthru
      _
    // Predicated region
    $region18: #{tpu_custom_call.1} parent=1 // pred_check
      _
    $region19: #{tpu_custom_call.1} parent=1 // pred_check_branch
      %22 = sbr.rel (0) target = $region21
    $region20: #{tpu_custom_call.1} parent=1 // pred_region
      _
    $region21: #{tpu_custom_call.1} parent=1 // pred_fallthru
      _
    // Predicated region
    $region22: #{tpu_custom_call.1} parent=1 // pred_check
      _
    $region23: #{tpu_custom_call.1} parent=1 // pred_check_branch
      %24 = sbr.rel (0) target = $region25
    $region24: #{tpu_custom_call.1} parent=1 // pred_region
      _
    $region25: #{tpu_custom_call.1} parent=1 // pred_fallthru
      _
    // Predicated region
    $region26: #{tpu_custom_call.1} parent=1 // pred_check
      _
    $region27: #{tpu_custom_call.1} parent=1 // pred_check_branch
      %26 = sbr.rel (0) target = $region29
    $region28: #{tpu_custom_call.1} parent=1 // pred_region
      _
    $region29: #{tpu_custom_call.1} parent=1 // pred_fallthru
      _
    %v28 = vld [vmem:[%s0] sm:$0xf]
    %v29 = vld [vmem:[%s0 + $0x4] sm:$0xf]
    %v30 = vld [vmem:[%s0 + $0x8] sm:$0xf]
    %v31 = vld [vmem:[%s0 + $0xc] sm:$0xf]
    %v32 = vld [vmem:[%s0 + $0x10] sm:$0xf]
    %v33 = vld [vmem:[%s0 + $0x14] sm:$0xf]
    %v34 = vld [vmem:[%s0 + $0x18] sm:$0xf]
    %v35 = vld [vmem:[%s0 + $0x1c] sm:$0xf]
    %v36 = vld [vmem:[%s0 + $0x20] sm:$0xf]
    %v37 = vld [vmem:[%s0 + $0x24] sm:$0xf]
    %v38 = vld [vmem:[%s0 + $0x28] sm:$0xf]
    %v39 = vld [vmem:[%s0 + $0x2c] sm:$0xf]
    %v40 = vld [vmem:[%s0 + $0x30] sm:$0xf]
    %v41 = vld [vmem:[%s0 + $0x34] sm:$0xf]
    %v42 = vld [vmem:[%s0 + $0x38] sm:$0xf]
    %v43 = vld [vmem:[%s0 + $0x3c] sm:$0xf]
    %v44 = vld [vmem:[%s0 + $0x40] sm:$0xf]
    %v45 = vld [vmem:[%s0 + $0x44] sm:$0xf]
    %v46 = vld [vmem:[%s0 + $0x48] sm:$0xf]
    %v47 = vld [vmem:[%s0 + $0x4c] sm:$0xf]
    %v48 = vld [vmem:[%s0 + $0x50] sm:$0xf]
    %v49 = vld [vmem:[%s0 + $0x54] sm:$0xf]
    %v50 = vld [vmem:[%s0 + $0x58] sm:$0xf]
    %v51 = vld [vmem:[%s0 + $0x5c] sm:$0xf]
    %v52 = vld [vmem:[%s0 + $0x60] sm:$0xf]
    %v53 = vld [vmem:[%s0 + $0x64] sm:$0xf]
    %v54 = vld [vmem:[%s0 + $0x68] sm:$0xf]
    %v55 = vld [vmem:[%s0 + $0x6c] sm:$0xf]
    %v56 = vld [vmem:[%s0 + $0x70] sm:$0xf]
    %v57 = vld [vmem:[%s0 + $0x74] sm:$0xf]
    %v58 = vld [vmem:[%s0 + $0x78] sm:$0xf]
    %v59 = vld [vmem:[%s0 + $0x7c] sm:$0xf]
    %v60 = vld [vmem:[%s1] sm:$0xf]
    %v61 = vld [vmem:[%s1 + $0x4] sm:$0xf]
    %v62 = vld [vmem:[%s1 + $0x8] sm:$0xf]
    %v63 = vld [vmem:[%s1 + $0xc] sm:$0xf]
    %v64 = vld [vmem:[%s1 + $0x10] sm:$0xf]
    %v65 = vld [vmem:[%s1 + $0x14] sm:$0xf]
    %v66 = vld [vmem:[%s1 + $0x18] sm:$0xf]
    %v67 = vld [vmem:[%s1 + $0x1c] sm:$0xf]
    %v68 = vld [vmem:[%s2] sm:$0x1]
    %v70 = vlaneseq
    %v71 = vshrl.u32 %v70, 7
    %v72 = vsub.s32 0, %v71
    %v73 = vrot.slane %v68, %v72
    %v107 = vunpack.c.l.b16 %v28
    %v108 = vunpack.c.l.b16 %v29
    %v109 = vunpack.c.l.b16 %v30
    %v110 = vunpack.c.l.b16 %v31
    %v111 = vunpack.c.l.b16 %v32
    %v112 = vunpack.c.l.b16 %v33
    %v113 = vunpack.c.l.b16 %v34
    %v114 = vunpack.c.l.b16 %v35
    %v115 = vunpack.c.l.b16 %v36
    %v116 = vunpack.c.l.b16 %v37
    %v117 = vunpack.c.l.b16 %v38
    %v118 = vunpack.c.l.b16 %v39
    %v119 = vunpack.c.l.b16 %v40
    %v120 = vunpack.c.l.b16 %v41
    %v121 = vunpack.c.l.b16 %v42
    %v122 = vunpack.c.l.b16 %v43
    %v123 = vunpack.c.l.b16 %v44
    %v124 = vunpack.c.l.b16 %v45
    %v125 = vunpack.c.l.b16 %v46
    %v126 = vunpack.c.l.b16 %v47
    %v127 = vunpack.c.l.b16 %v48
    %v128 = vunpack.c.l.b16 %v49
    %v129 = vunpack.c.l.b16 %v50
    %v130 = vunpack.c.l.b16 %v51
    %v131 = vunpack.c.l.b16 %v52
    %v132 = vunpack.c.l.b16 %v53
    %v133 = vunpack.c.l.b16 %v54
    %v134 = vunpack.c.l.b16 %v55
    %v135 = vunpack.c.l.b16 %v56
    %v136 = vunpack.c.l.b16 %v57
    %v137 = vunpack.c.l.b16 %v58
    %v138 = vunpack.c.l.b16 %v59
    %v139 = vpack.c.b16 %v108, %v107
    %v140 = vpack.c.b16 %v110, %v109
    %v141 = vpack.c.b16 %v112, %v111
    %v142 = vpack.c.b16 %v114, %v113
    %v143 = vpack.c.b16 %v116, %v115
    %v144 = vpack.c.b16 %v118, %v117
    %v145 = vpack.c.b16 %v120, %v119
    %v146 = vpack.c.b16 %v122, %v121
    %v147 = vpack.c.b16 %v124, %v123
    %v148 = vpack.c.b16 %v126, %v125
    %v149 = vpack.c.b16 %v128, %v127
    %v150 = vpack.c.b16 %v130, %v129
    %v151 = vpack.c.b16 %v132, %v131
    %v152 = vpack.c.b16 %v134, %v133
    %v153 = vpack.c.b16 %v136, %v135
    %v154 = vpack.c.b16 %v138, %v137
    %v163 = vunpack.c.l.b16 %v60
    %v164 = vunpack.c.l.b16 %v61
    %v165 = vunpack.c.l.b16 %v62
    %v166 = vunpack.c.l.b16 %v63
    %v167 = vunpack.c.l.b16 %v64
    %v168 = vunpack.c.l.b16 %v65
    %v169 = vunpack.c.l.b16 %v66
    %v170 = vunpack.c.l.b16 %v67
    %v171 = vpack.c.b16 %v164, %v163
    %v172 = vpack.c.b16 %v166, %v165
    %v173 = vpack.c.b16 %v168, %v167
    %v174 = vpack.c.b16 %v170, %v169
    %vm179 = vcmask 523264
    %v181 = vsel %vm179, %v139, 0
    %v184 = vsel %vm179, %v140, 0
    %v187 = vsel %vm179, %v141, 0
    %v190 = vsel %vm179, %v142, 0
    %v193 = vsel %vm179, %v143, 0
    %v196 = vsel %vm179, %v144, 0
    %v199 = vsel %vm179, %v145, 0
    %v202 = vsel %vm179, %v146, 0
    %v205 = vsel %vm179, %v147, 0
    %v208 = vsel %vm179, %v148, 0
    %v211 = vsel %vm179, %v149, 0
    %v214 = vsel %vm179, %v150, 0
    %v217 = vsel %vm179, %v151, 0
    %v220 = vsel %vm179, %v152, 0
    %v223 = vsel %vm179, %v153, 0
    %v226 = vsel %vm179, %v154, 0
    %228 = vmatprep.subr.bf16.mxu0 0
    %229 = vmatpush1.bf16.msra.mxu0 0
    %230 = vmatprep.subr.bf16.mxu0 0
    %231 = vmatpush1.bf16.msra.mxu0 0
    %232 = vmatprep.subr.bf16.mxu0 0
    %233 = vmatpush1.bf16.msra.mxu0 0
    %234 = vmatprep.subr.bf16.mxu0 0
    %235 = vmatpush1.bf16.msra.mxu0 0
    %236 = vmatprep.subr.bf16.mxu0 0
    %237 = vmatpush1.bf16.msra.mxu0 %v174
    %238 = vmatprep.subr.bf16.mxu0 0
    %239 = vmatpush1.bf16.msra.mxu0 %v173
    %240 = vmatprep.subr.bf16.mxu0 0
    %241 = vmatpush1.bf16.msra.mxu0 %v172
    %242 = vmatprep.subr.bf16.mxu0 0
    %243 = vmatpush1.bf16.msra.mxu0 %v171
    %244 = vmatprep.subr.bf16.mxu0 0
    %245 = vmatpush2.bf16.msra.mxu0 0
    %246 = vmatprep.subr.bf16.mxu0 0
    %247 = vmatpush2.bf16.msra.mxu0 0
    %248 = vmatprep.subr.bf16.mxu0 0
    %249 = vmatpush2.bf16.msra.mxu0 0
    %250 = vmatprep.subr.bf16.mxu0 0
    %251 = vmatpush2.bf16.msra.mxu0 0
    %252 = vmatprep.subr.bf16.mxu0 0
    %253 = vmatpush2.bf16.msra.mxu0 0
    %254 = vmatprep.subr.bf16.mxu0 0
    %255 = vmatpush2.bf16.msra.mxu0 0
    %256 = vmatprep.subr.bf16.mxu0 0
    %257 = vmatpush2.bf16.msra.mxu0 0
    %258 = vmatprep.subr.bf16.mxu0 0
    %259 = vmatpush2.bf16.msra.mxu0 0
    %260 = vmatprep.mubr.bf16.mxu0 0
    %261 = vmatmul.mubr.bf16.gmra.mxu0 %v181
    %v262 = vpop.f32.mrf.mxu0
    %v263 = vadd.f32 %v73, %v262
    %v264 = vpop.f32.mrf.mxu0
    %v265 = vpop.f32.mrf.mxu0
    %v266 = vadd.f32 %v73, %v265
    %v267 = vpop.f32.mrf.mxu0
    %268 = vmatprep.mubr.bf16.mxu0 0
    %269 = vmatmul.mubr.bf16.gmra.mxu0 %v184
    %v270 = vpop.f32.mrf.mxu0
    %v271 = vadd.f32 %v73, %v270
    %v272 = vpop.f32.mrf.mxu0
    %v273 = vpop.f32.mrf.mxu0
    %v274 = vadd.f32 %v73, %v273
    %v275 = vpop.f32.mrf.mxu0
    %276 = vmatprep.mubr.bf16.mxu0 0
    %277 = vmatmul.mubr.bf16.gmra.mxu0 %v187
    %v278 = vpop.f32.mrf.mxu0
    %v279 = vadd.f32 %v73, %v278
    %v280 = vpop.f32.mrf.mxu0
    %v281 = vpop.f32.mrf.mxu0
    %v282 = vadd.f32 %v73, %v281
    %v283 = vpop.f32.mrf.mxu0
    %284 = vmatprep.mubr.bf16.mxu0 0
    %285 = vmatmul.mubr.bf16.gmra.mxu0 %v190
    %v286 = vpop.f32.mrf.mxu0
    %v287 = vadd.f32 %v73, %v286
    %v288 = vpop.f32.mrf.mxu0
    %v289 = vpop.f32.mrf.mxu0
    %v290 = vadd.f32 %v73, %v289
    %v291 = vpop.f32.mrf.mxu0
    %292 = vmatprep.mubr.bf16.mxu0 0
    %293 = vmatmul.mubr.bf16.gmra.mxu0 %v193
    %v294 = vpop.f32.mrf.mxu0
    %v295 = vadd.f32 %v73, %v294
    %v296 = vpop.f32.mrf.mxu0
    %v297 = vpop.f32.mrf.mxu0
    %v298 = vadd.f32 %v73, %v297
    %v299 = vpop.f32.mrf.mxu0
    %300 = vmatprep.mubr.bf16.mxu0 0
    %301 = vmatmul.mubr.bf16.gmra.mxu0 %v196
    %v302 = vpop.f32.mrf.mxu0
    %v303 = vadd.f32 %v73, %v302
    %v304 = vpop.f32.mrf.mxu0
    %v305 = vpop.f32.mrf.mxu0
    %v306 = vadd.f32 %v73, %v305
    %v307 = vpop.f32.mrf.mxu0
    %308 = vmatprep.mubr.bf16.mxu0 0
    %309 = vmatmul.mubr.bf16.gmra.mxu0 %v199
    %v310 = vpop.f32.mrf.mxu0
    %v311 = vadd.f32 %v73, %v310
    %v312 = vpop.f32.mrf.mxu0
    %v313 = vpop.f32.mrf.mxu0
    %v314 = vadd.f32 %v73, %v313
    %v315 = vpop.f32.mrf.mxu0
    %316 = vmatprep.mubr.bf16.mxu0 0
    %317 = vmatmul.mubr.bf16.gmra.mxu0 %v202
    %v318 = vpop.f32.mrf.mxu0
    %v319 = vadd.f32 %v73, %v318
    %v320 = vpop.f32.mrf.mxu0
    %v321 = vpop.f32.mrf.mxu0
    %v322 = vadd.f32 %v73, %v321
    %v323 = vpop.f32.mrf.mxu0
    %324 = vmatprep.mubr.bf16.mxu0 0
    %325 = vmatmul.mubr.bf16.gmra.mxu0 %v205
    %v326 = vpop.f32.mrf.mxu0
    %v327 = vadd.f32 %v73, %v326
    %v328 = vpop.f32.mrf.mxu0
    %v329 = vpop.f32.mrf.mxu0
    %v330 = vadd.f32 %v73, %v329
    %v331 = vpop.f32.mrf.mxu0
    %332 = vmatprep.mubr.bf16.mxu0 0
    %333 = vmatmul.mubr.bf16.gmra.mxu0 %v208
    %v334 = vpop.f32.mrf.mxu0
    %v335 = vadd.f32 %v73, %v334
    %v336 = vpop.f32.mrf.mxu0
    %v337 = vpop.f32.mrf.mxu0
    %v338 = vadd.f32 %v73, %v337
    %v339 = vpop.f32.mrf.mxu0
    %340 = vmatprep.mubr.bf16.mxu0 0
    %341 = vmatmul.mubr.bf16.gmra.mxu0 %v211
    %v342 = vpop.f32.mrf.mxu0
    %v343 = vadd.f32 %v73, %v342
    %v344 = vpop.f32.mrf.mxu0
    %v345 = vpop.f32.mrf.mxu0
    %v346 = vadd.f32 %v73, %v345
    %v347 = vpop.f32.mrf.mxu0
    %348 = vmatprep.mubr.bf16.mxu0 0
    %349 = vmatmul.mubr.bf16.gmra.mxu0 %v214
    %v350 = vpop.f32.mrf.mxu0
    %v351 = vadd.f32 %v73, %v350
    %v352 = vpop.f32.mrf.mxu0
    %v353 = vpop.f32.mrf.mxu0
    %v354 = vadd.f32 %v73, %v353
    %v355 = vpop.f32.mrf.mxu0
    %356 = vmatprep.mubr.bf16.mxu0 0
    %357 = vmatmul.mubr.bf16.gmra.mxu0 %v217
    %v358 = vpop.f32.mrf.mxu0
    %v359 = vadd.f32 %v73, %v358
    %v360 = vpop.f32.mrf.mxu0
    %v361 = vpop.f32.mrf.mxu0
    %v362 = vadd.f32 %v73, %v361
    %v363 = vpop.f32.mrf.mxu0
    %364 = vmatprep.mubr.bf16.mxu0 0
    %365 = vmatmul.mubr.bf16.gmra.mxu0 %v220
    %v366 = vpop.f32.mrf.mxu0
    %v367 = vadd.f32 %v73, %v366
    %v368 = vpop.f32.mrf.mxu0
    %v369 = vpop.f32.mrf.mxu0
    %v370 = vadd.f32 %v73, %v369
    %v371 = vpop.f32.mrf.mxu0
    %372 = vmatprep.mubr.bf16.mxu0 0
    %373 = vmatmul.mubr.bf16.gmra.mxu0 %v223
    %v374 = vpop.f32.mrf.mxu0
    %v375 = vadd.f32 %v73, %v374
    %v376 = vpop.f32.mrf.mxu0
    %v377 = vpop.f32.mrf.mxu0
    %v378 = vadd.f32 %v73, %v377
    %v379 = vpop.f32.mrf.mxu0
    %380 = vmatprep.mubr.bf16.mxu0 0
    %381 = vmatmul.mubr.bf16.gmra.mxu0 %v226
    %v382 = vpop.f32.mrf.mxu0
    %v383 = vadd.f32 %v73, %v382
    %v384 = vpop.f32.mrf.mxu0
    %v385 = vpop.f32.mrf.mxu0
    %v386 = vadd.f32 %v73, %v385
    %v387 = vpop.f32.mrf.mxu0
    %388 = vdwg.mxu0
    %v389 = vmax.f32 %v263, 0.0
    %v390 = vmax.f32 %v266, 0.0
    %v391 = vmax.f32 %v271, 0.0
    %v392 = vmax.f32 %v274, 0.0
    %v393 = vmax.f32 %v279, 0.0
    %v394 = vmax.f32 %v282, 0.0
    %v395 = vmax.f32 %v287, 0.0
    %v396 = vmax.f32 %v290, 0.0
    %v397 = vmax.f32 %v295, 0.0
    %v398 = vmax.f32 %v298, 0.0
    %v399 = vmax.f32 %v303, 0.0
    %v400 = vmax.f32 %v306, 0.0
    %v401 = vmax.f32 %v311, 0.0
    %v402 = vmax.f32 %v314, 0.0
    %v403 = vmax.f32 %v319, 0.0
    %v404 = vmax.f32 %v322, 0.0
    %v405 = vmax.f32 %v327, 0.0
    %v406 = vmax.f32 %v330, 0.0
    %v407 = vmax.f32 %v335, 0.0
    %v408 = vmax.f32 %v338, 0.0
    %v409 = vmax.f32 %v343, 0.0
    %v410 = vmax.f32 %v346, 0.0
    %v411 = vmax.f32 %v351, 0.0
    %v412 = vmax.f32 %v354, 0.0
    %v413 = vmax.f32 %v359, 0.0
    %v414 = vmax.f32 %v362, 0.0
    %v415 = vmax.f32 %v367, 0.0
    %v416 = vmax.f32 %v370, 0.0
    %v417 = vmax.f32 %v375, 0.0
    %v418 = vmax.f32 %v378, 0.0
    %v419 = vmax.f32 %v383, 0.0
    %v420 = vmax.f32 %v386, 0.0
    %v421 = vld [vmem:[%s3] sm:$0xf]
    %v422 = vld [vmem:[%s3 + $0x4] sm:$0xf]
    %v423 = vld [vmem:[%s3 + $0x8] sm:$0xf]
    %v424 = vld [vmem:[%s3 + $0xc] sm:$0xf]
    %v425 = vld [vmem:[%s3 + $0x10] sm:$0xf]
    %v426 = vld [vmem:[%s3 + $0x14] sm:$0xf]
    %v427 = vld [vmem:[%s4] sm:$0x1]
    %v428 = vpack.c.bf16 %v390, %v389
    %v429 = vpack.c.bf16 %v392, %v391
    %v430 = vpack.c.bf16 %v394, %v393
    %v431 = vpack.c.bf16 %v396, %v395
    %v432 = vpack.c.bf16 %v398, %v397
    %v433 = vpack.c.bf16 %v400, %v399
    %v434 = vpack.c.bf16 %v402, %v401
    %v435 = vpack.c.bf16 %v404, %v403
    %v436 = vpack.c.bf16 %v406, %v405
    %v437 = vpack.c.bf16 %v408, %v407
    %v438 = vpack.c.bf16 %v410, %v409
    %v439 = vpack.c.bf16 %v412, %v411
    %v440 = vpack.c.bf16 %v414, %v413
    %v441 = vpack.c.bf16 %v416, %v415
    %v442 = vpack.c.bf16 %v418, %v417
    %v443 = vpack.c.bf16 %v420, %v419
    %v445 = vlaneseq
    %v446 = vshrl.u32 %v445, 7
    %v447 = vsub.s32 0, %v446
    %v448 = vrot.slane %v427, %v447
    %v456 = vunpack.c.l.b16 %v421
    %v457 = vunpack.c.l.b16 %v422
    %v458 = vunpack.c.l.b16 %v423
    %v459 = vunpack.c.l.b16 %v424
    %v460 = vunpack.c.l.b16 %v425
    %v461 = vunpack.c.l.b16 %v426
    %v462 = vpack.c.b16 %v457, %v456
    %v463 = vpack.c.b16 %v459, %v458
    %v464 = vpack.c.b16 %v461, %v460
    %vm468 = vcmask 392192
    %v470 = vsel %vm468, %v428, 0
    %v473 = vsel %vm468, %v429, 0
    %v476 = vsel %vm468, %v430, 0
    %v479 = vsel %vm468, %v431, 0
    %v482 = vsel %vm468, %v432, 0
    %v485 = vsel %vm468, %v433, 0
    %v488 = vsel %vm468, %v434, 0
    %v491 = vsel %vm468, %v435, 0
    %v494 = vsel %vm468, %v436, 0
    %v497 = vsel %vm468, %v437, 0
    %v500 = vsel %vm468, %v438, 0
    %v503 = vsel %vm468, %v439, 0
    %v506 = vsel %vm468, %v440, 0
    %v509 = vsel %vm468, %v441, 0
    %v512 = vsel %vm468, %v442, 0
    %v515 = vsel %vm468, %v443, 0
    %517 = vmatprep.subr.bf16.mxu0 0
    %518 = vmatpush1.bf16.msra.mxu0 0
    %519 = vmatprep.subr.bf16.mxu0 0
    %520 = vmatpush1.bf16.msra.mxu0 0
    %521 = vmatprep.subr.bf16.mxu0 0
    %522 = vmatpush1.bf16.msra.mxu0 0
    %523 = vmatprep.subr.bf16.mxu0 0
    %524 = vmatpush1.bf16.msra.mxu0 0
    %525 = vmatprep.subr.bf16.mxu0 0
    %526 = vmatpush1.bf16.msra.mxu0 0
    %527 = vmatprep.subr.bf16.mxu0 0
    %528 = vmatpush1.bf16.msra.mxu0 %v464
    %529 = vmatprep.subr.bf16.mxu0 0
    %530 = vmatpush1.bf16.msra.mxu0 %v463
    %531 = vmatprep.subr.bf16.mxu0 0
    %532 = vmatpush1.bf16.msra.mxu0 %v462
    %533 = vmatprep.subr.bf16.mxu0 0
    %534 = vmatpush2.bf16.msra.mxu0 0
    %535 = vmatprep.subr.bf16.mxu0 0
    %536 = vmatpush2.bf16.msra.mxu0 0
    %537 = vmatprep.subr.bf16.mxu0 0
    %538 = vmatpush2.bf16.msra.mxu0 0
    %539 = vmatprep.subr.bf16.mxu0 0
    %540 = vmatpush2.bf16.msra.mxu0 0
    %541 = vmatprep.subr.bf16.mxu0 0
    %542 = vmatpush2.bf16.msra.mxu0 0
    %543 = vmatprep.subr.bf16.mxu0 0
    %544 = vmatpush2.bf16.msra.mxu0 0
    %545 = vmatprep.subr.bf16.mxu0 0
    %546 = vmatpush2.bf16.msra.mxu0 0
    %547 = vmatprep.subr.bf16.mxu0 0
    %548 = vmatpush2.bf16.msra.mxu0 0
    %549 = vmatprep.mubr.bf16.mxu0 0
    %550 = vmatmul.mubr.bf16.gmra.mxu0 %v470
    %v551 = vpop.f32.mrf.mxu0
    %v552 = vadd.f32 %v448, %v551
    %v553 = vpop.f32.mrf.mxu0
    %v554 = vpop.f32.mrf.mxu0
    %v555 = vadd.f32 %v448, %v554
    %v556 = vpop.f32.mrf.mxu0
    %557 = vmatprep.mubr.bf16.mxu0 0
    %558 = vmatmul.mubr.bf16.gmra.mxu0 %v473
    %v559 = vpop.f32.mrf.mxu0
    %v560 = vadd.f32 %v448, %v559
    %v561 = vpop.f32.mrf.mxu0
    %v562 = vpop.f32.mrf.mxu0
    %v563 = vadd.f32 %v448, %v562
    %v564 = vpop.f32.mrf.mxu0
    %565 = vmatprep.mubr.bf16.mxu0 0
    %566 = vmatmul.mubr.bf16.gmra.mxu0 %v476
    %v567 = vpop.f32.mrf.mxu0
    %v568 = vadd.f32 %v448, %v567
    %v569 = vpop.f32.mrf.mxu0
    %v570 = vpop.f32.mrf.mxu0
    %v571 = vadd.f32 %v448, %v570
    %v572 = vpop.f32.mrf.mxu0
    %573 = vmatprep.mubr.bf16.mxu0 0
    %574 = vmatmul.mubr.bf16.gmra.mxu0 %v479
    %v575 = vpop.f32.mrf.mxu0
    %v576 = vadd.f32 %v448, %v575
    %v577 = vpop.f32.mrf.mxu0
    %v578 = vpop.f32.mrf.mxu0
    %v579 = vadd.f32 %v448, %v578
    %v580 = vpop.f32.mrf.mxu0
    %581 = vmatprep.mubr.bf16.mxu0 0
    %582 = vmatmul.mubr.bf16.gmra.mxu0 %v482
    %v583 = vpop.f32.mrf.mxu0
    %v584 = vadd.f32 %v448, %v583
    %v585 = vpop.f32.mrf.mxu0
    %v586 = vpop.f32.mrf.mxu0
    %v587 = vadd.f32 %v448, %v586
    %v588 = vpop.f32.mrf.mxu0
    %589 = vmatprep.mubr.bf16.mxu0 0
    %590 = vmatmul.mubr.bf16.gmra.mxu0 %v485
    %v591 = vpop.f32.mrf.mxu0
    %v592 = vadd.f32 %v448, %v591
    %v593 = vpop.f32.mrf.mxu0
    %v594 = vpop.f32.mrf.mxu0
    %v595 = vadd.f32 %v448, %v594
    %v596 = vpop.f32.mrf.mxu0
    %597 = vmatprep.mubr.bf16.mxu0 0
    %598 = vmatmul.mubr.bf16.gmra.mxu0 %v488
    %v599 = vpop.f32.mrf.mxu0
    %v600 = vadd.f32 %v448, %v599
    %v601 = vpop.f32.mrf.mxu0
    %v602 = vpop.f32.mrf.mxu0
    %v603 = vadd.f32 %v448, %v602
    %v604 = vpop.f32.mrf.mxu0
    %605 = vmatprep.mubr.bf16.mxu0 0
    %606 = vmatmul.mubr.bf16.gmra.mxu0 %v491
    %v607 = vpop.f32.mrf.mxu0
    %v608 = vadd.f32 %v448, %v607
    %v609 = vpop.f32.mrf.mxu0
    %v610 = vpop.f32.mrf.mxu0
    %v611 = vadd.f32 %v448, %v610
    %v612 = vpop.f32.mrf.mxu0
    %613 = vmatprep.mubr.bf16.mxu0 0
    %614 = vmatmul.mubr.bf16.gmra.mxu0 %v494
    %v615 = vpop.f32.mrf.mxu0
    %v616 = vadd.f32 %v448, %v615
    %v617 = vpop.f32.mrf.mxu0
    %v618 = vpop.f32.mrf.mxu0
    %v619 = vadd.f32 %v448, %v618
    %v620 = vpop.f32.mrf.mxu0
    %621 = vmatprep.mubr.bf16.mxu0 0
    %622 = vmatmul.mubr.bf16.gmra.mxu0 %v497
    %v623 = vpop.f32.mrf.mxu0
    %v624 = vadd.f32 %v448, %v623
    %v625 = vpop.f32.mrf.mxu0
    %v626 = vpop.f32.mrf.mxu0
    %v627 = vadd.f32 %v448, %v626
    %v628 = vpop.f32.mrf.mxu0
    %629 = vmatprep.mubr.bf16.mxu0 0
    %630 = vmatmul.mubr.bf16.gmra.mxu0 %v500
    %v631 = vpop.f32.mrf.mxu0
    %v632 = vadd.f32 %v448, %v631
    %v633 = vpop.f32.mrf.mxu0
    %v634 = vpop.f32.mrf.mxu0
    %v635 = vadd.f32 %v448, %v634
    %v636 = vpop.f32.mrf.mxu0
    %637 = vmatprep.mubr.bf16.mxu0 0
    %638 = vmatmul.mubr.bf16.gmra.mxu0 %v503
    %v639 = vpop.f32.mrf.mxu0
    %v640 = vadd.f32 %v448, %v639
    %v641 = vpop.f32.mrf.mxu0
    %v642 = vpop.f32.mrf.mxu0
    %v643 = vadd.f32 %v448, %v642
    %v644 = vpop.f32.mrf.mxu0
    %645 = vmatprep.mubr.bf16.mxu0 0
    %646 = vmatmul.mubr.bf16.gmra.mxu0 %v506
    %v647 = vpop.f32.mrf.mxu0
    %v648 = vadd.f32 %v448, %v647
    %v649 = vpop.f32.mrf.mxu0
    %v650 = vpop.f32.mrf.mxu0
    %v651 = vadd.f32 %v448, %v650
    %v652 = vpop.f32.mrf.mxu0
    %653 = vmatprep.mubr.bf16.mxu0 0
    %654 = vmatmul.mubr.bf16.gmra.mxu0 %v509
    %v655 = vpop.f32.mrf.mxu0
    %v656 = vadd.f32 %v448, %v655
    %v657 = vpop.f32.mrf.mxu0
    %v658 = vpop.f32.mrf.mxu0
    %v659 = vadd.f32 %v448, %v658
    %v660 = vpop.f32.mrf.mxu0
    %661 = vmatprep.mubr.bf16.mxu0 0
    %662 = vmatmul.mubr.bf16.gmra.mxu0 %v512
    %v663 = vpop.f32.mrf.mxu0
    %v664 = vadd.f32 %v448, %v663
    %v665 = vpop.f32.mrf.mxu0
    %v666 = vpop.f32.mrf.mxu0
    %v667 = vadd.f32 %v448, %v666
    %v668 = vpop.f32.mrf.mxu0
    %669 = vmatprep.mubr.bf16.mxu0 0
    %670 = vmatmul.mubr.bf16.gmra.mxu0 %v515
    %v671 = vpop.f32.mrf.mxu0
    %v672 = vadd.f32 %v448, %v671
    %v673 = vpop.f32.mrf.mxu0
    %v674 = vpop.f32.mrf.mxu0
    %v675 = vadd.f32 %v448, %v674
    %v676 = vpop.f32.mrf.mxu0
    %677 = vdwg.mxu0
    %v678 = vmax.f32 %v552, 0.0
    %v679 = vmax.f32 %v555, 0.0
    %v680 = vmax.f32 %v560, 0.0
    %v681 = vmax.f32 %v563, 0.0
    %v682 = vmax.f32 %v568, 0.0
    %v683 = vmax.f32 %v571, 0.0
    %v684 = vmax.f32 %v576, 0.0
    %v685 = vmax.f32 %v579, 0.0
    %v686 = vmax.f32 %v584, 0.0
    %v687 = vmax.f32 %v587, 0.0
    %v688 = vmax.f32 %v592, 0.0
    %v689 = vmax.f32 %v595, 0.0
    %v690 = vmax.f32 %v600, 0.0
    %v691 = vmax.f32 %v603, 0.0
    %v692 = vmax.f32 %v608, 0.0
    %v693 = vmax.f32 %v611, 0.0
    %v694 = vmax.f32 %v616, 0.0
    %v695 = vmax.f32 %v619, 0.0
    %v696 = vmax.f32 %v624, 0.0
    %v697 = vmax.f32 %v627, 0.0
    %v698 = vmax.f32 %v632, 0.0
    %v699 = vmax.f32 %v635, 0.0
    %v700 = vmax.f32 %v640, 0.0
    %v701 = vmax.f32 %v643, 0.0
    %v702 = vmax.f32 %v648, 0.0
    %v703 = vmax.f32 %v651, 0.0
    %v704 = vmax.f32 %v656, 0.0
    %v705 = vmax.f32 %v659, 0.0
    %v706 = vmax.f32 %v664, 0.0
    %v707 = vmax.f32 %v667, 0.0
    %v708 = vmax.f32 %v672, 0.0
    %v709 = vmax.f32 %v675, 0.0
    %v710 = vld [vmem:[%s5] sm:$0xf]
    %v711 = vld [vmem:[%s5 + $0x4] sm:$0xf]
    %v712 = vld [vmem:[%s5 + $0x8] sm:$0xf]
    %v713 = vld [vmem:[%s5 + $0xc] sm:$0xf]
    %v714 = vld [vmem:[%s6] sm:$0x1]
    %v715 = vpack.c.bf16 %v679, %v678
    %v716 = vpack.c.bf16 %v681, %v680
    %v717 = vpack.c.bf16 %v683, %v682
    %v718 = vpack.c.bf16 %v685, %v684
    %v719 = vpack.c.bf16 %v687, %v686
    %v720 = vpack.c.bf16 %v689, %v688
    %v721 = vpack.c.bf16 %v691, %v690
    %v722 = vpack.c.bf16 %v693, %v692
    %v723 = vpack.c.bf16 %v695, %v694
    %v724 = vpack.c.bf16 %v697, %v696
    %v725 = vpack.c.bf16 %v699, %v698
    %v726 = vpack.c.bf16 %v701, %v700
    %v727 = vpack.c.bf16 %v703, %v702
    %v728 = vpack.c.bf16 %v705, %v704
    %v729 = vpack.c.bf16 %v707, %v706
    %v730 = vpack.c.bf16 %v709, %v708
    %v732 = vlaneseq
    %v733 = vshrl.u32 %v732, 7
    %v734 = vsub.s32 0, %v733
    %v735 = vrot.slane %v714, %v734
    %v741 = vunpack.c.l.b16 %v710
    %v742 = vunpack.c.l.b16 %v711
    %v743 = vunpack.c.l.b16 %v712
    %v744 = vunpack.c.l.b16 %v713
    %v745 = vpack.c.b16 %v742, %v741
    %v746 = vpack.c.b16 %v744, %v743
    %vm749 = vcmask 261120
    %v751 = vsel %vm749, %v715, 0
    %v754 = vsel %vm749, %v716, 0
    %v757 = vsel %vm749, %v717, 0
    %v760 = vsel %vm749, %v718, 0
    %v763 = vsel %vm749, %v719, 0
    %v766 = vsel %vm749, %v720, 0
    %v769 = vsel %vm749, %v721, 0
    %v772 = vsel %vm749, %v722, 0
    %v775 = vsel %vm749, %v723, 0
    %v778 = vsel %vm749, %v724, 0
    %v781 = vsel %vm749, %v725, 0
    %v784 = vsel %vm749, %v726, 0
    %v787 = vsel %vm749, %v727, 0
    %v790 = vsel %vm749, %v728, 0
    %v793 = vsel %vm749, %v729, 0
    %v796 = vsel %vm749, %v730, 0
    %798 = vmatprep.subr.bf16.mxu0 0
    %799 = vmatpush1.bf16.msra.mxu0 0
    %800 = vmatprep.subr.bf16.mxu0 0
    %801 = vmatpush1.bf16.msra.mxu0 0
    %802 = vmatprep.subr.bf16.mxu0 0
    %803 = vmatpush1.bf16.msra.mxu0 0
    %804 = vmatprep.subr.bf16.mxu0 0
    %805 = vmatpush1.bf16.msra.mxu0 0
    %806 = vmatprep.subr.bf16.mxu0 0
    %807 = vmatpush1.bf16.msra.mxu0 0
    %808 = vmatprep.subr.bf16.mxu0 0
    %809 = vmatpush1.bf16.msra.mxu0 0
    %810 = vmatprep.subr.bf16.mxu0 0
    %811 = vmatpush1.bf16.msra.mxu0 %v746
    %812 = vmatprep.subr.bf16.mxu0 0
    %813 = vmatpush1.bf16.msra.mxu0 %v745
    %814 = vmatprep.subr.bf16.mxu0 0
    %815 = vmatpush2.bf16.msra.mxu0 0
    %816 = vmatprep.subr.bf16.mxu0 0
    %817 = vmatpush2.bf16.msra.mxu0 0
    %818 = vmatprep.subr.bf16.mxu0 0
    %819 = vmatpush2.bf16.msra.mxu0 0
    %820 = vmatprep.subr.bf16.mxu0 0
    %821 = vmatpush2.bf16.msra.mxu0 0
    %822 = vmatprep.subr.bf16.mxu0 0
    %823 = vmatpush2.bf16.msra.mxu0 0
    %824 = vmatprep.subr.bf16.mxu0 0
    %825 = vmatpush2.bf16.msra.mxu0 0
    %826 = vmatprep.subr.bf16.mxu0 0
    %827 = vmatpush2.bf16.msra.mxu0 0
    %828 = vmatprep.subr.bf16.mxu0 0
    %829 = vmatpush2.bf16.msra.mxu0 0
    %830 = vmatprep.mubr.bf16.mxu0 0
    %831 = vmatmul.mubr.bf16.gmra.mxu0 %v751
    %v832 = vpop.f32.mrf.mxu0
    %v833 = vadd.f32 %v735, %v832
    %v834 = vpop.f32.mrf.mxu0
    %v835 = vpop.f32.mrf.mxu0
    %v836 = vadd.f32 %v735, %v835
    %v837 = vpop.f32.mrf.mxu0
    %838 = vmatprep.mubr.bf16.mxu0 0
    %839 = vmatmul.mubr.bf16.gmra.mxu0 %v754
    %v840 = vpop.f32.mrf.mxu0
    %v841 = vadd.f32 %v735, %v840
    %v842 = vpop.f32.mrf.mxu0
    %v843 = vpop.f32.mrf.mxu0
    %v844 = vadd.f32 %v735, %v843
    %v845 = vpop.f32.mrf.mxu0
    %846 = vmatprep.mubr.bf16.mxu0 0
    %847 = vmatmul.mubr.bf16.gmra.mxu0 %v757
    %v848 = vpop.f32.mrf.mxu0
    %v849 = vadd.f32 %v735, %v848
    %v850 = vpop.f32.mrf.mxu0
    %v851 = vpop.f32.mrf.mxu0
    %v852 = vadd.f32 %v735, %v851
    %v853 = vpop.f32.mrf.mxu0
    %854 = vmatprep.mubr.bf16.mxu0 0
    %855 = vmatmul.mubr.bf16.gmra.mxu0 %v760
    %v856 = vpop.f32.mrf.mxu0
    %v857 = vadd.f32 %v735, %v856
    %v858 = vpop.f32.mrf.mxu0
    %v859 = vpop.f32.mrf.mxu0
    %v860 = vadd.f32 %v735, %v859
    %v861 = vpop.f32.mrf.mxu0
    %862 = vmatprep.mubr.bf16.mxu0 0
    %863 = vmatmul.mubr.bf16.gmra.mxu0 %v763
    %v864 = vpop.f32.mrf.mxu0
    %v865 = vadd.f32 %v735, %v864
    %v866 = vpop.f32.mrf.mxu0
    %v867 = vpop.f32.mrf.mxu0
    %v868 = vadd.f32 %v735, %v867
    %v869 = vpop.f32.mrf.mxu0
    %870 = vmatprep.mubr.bf16.mxu0 0
    %871 = vmatmul.mubr.bf16.gmra.mxu0 %v766
    %v872 = vpop.f32.mrf.mxu0
    %v873 = vadd.f32 %v735, %v872
    %v874 = vpop.f32.mrf.mxu0
    %v875 = vpop.f32.mrf.mxu0
    %v876 = vadd.f32 %v735, %v875
    %v877 = vpop.f32.mrf.mxu0
    %878 = vmatprep.mubr.bf16.mxu0 0
    %879 = vmatmul.mubr.bf16.gmra.mxu0 %v769
    %v880 = vpop.f32.mrf.mxu0
    %v881 = vadd.f32 %v735, %v880
    %v882 = vpop.f32.mrf.mxu0
    %v883 = vpop.f32.mrf.mxu0
    %v884 = vadd.f32 %v735, %v883
    %v885 = vpop.f32.mrf.mxu0
    %886 = vmatprep.mubr.bf16.mxu0 0
    %887 = vmatmul.mubr.bf16.gmra.mxu0 %v772
    %v888 = vpop.f32.mrf.mxu0
    %v889 = vadd.f32 %v735, %v888
    %v890 = vpop.f32.mrf.mxu0
    %v891 = vpop.f32.mrf.mxu0
    %v892 = vadd.f32 %v735, %v891
    %v893 = vpop.f32.mrf.mxu0
    %894 = vmatprep.mubr.bf16.mxu0 0
    %895 = vmatmul.mubr.bf16.gmra.mxu0 %v775
    %v896 = vpop.f32.mrf.mxu0
    %v897 = vadd.f32 %v735, %v896
    %v898 = vpop.f32.mrf.mxu0
    %v899 = vpop.f32.mrf.mxu0
    %v900 = vadd.f32 %v735, %v899
    %v901 = vpop.f32.mrf.mxu0
    %902 = vmatprep.mubr.bf16.mxu0 0
    %903 = vmatmul.mubr.bf16.gmra.mxu0 %v778
    %v904 = vpop.f32.mrf.mxu0
    %v905 = vadd.f32 %v735, %v904
    %v906 = vpop.f32.mrf.mxu0
    %v907 = vpop.f32.mrf.mxu0
    %v908 = vadd.f32 %v735, %v907
    %v909 = vpop.f32.mrf.mxu0
    %910 = vmatprep.mubr.bf16.mxu0 0
    %911 = vmatmul.mubr.bf16.gmra.mxu0 %v781
    %v912 = vpop.f32.mrf.mxu0
    %v913 = vadd.f32 %v735, %v912
    %v914 = vpop.f32.mrf.mxu0
    %v915 = vpop.f32.mrf.mxu0
    %v916 = vadd.f32 %v735, %v915
    %v917 = vpop.f32.mrf.mxu0
    %918 = vmatprep.mubr.bf16.mxu0 0
    %919 = vmatmul.mubr.bf16.gmra.mxu0 %v784
    %v920 = vpop.f32.mrf.mxu0
    %v921 = vadd.f32 %v735, %v920
    %v922 = vpop.f32.mrf.mxu0
    %v923 = vpop.f32.mrf.mxu0
    %v924 = vadd.f32 %v735, %v923
    %v925 = vpop.f32.mrf.mxu0
    %926 = vmatprep.mubr.bf16.mxu0 0
    %927 = vmatmul.mubr.bf16.gmra.mxu0 %v787
    %v928 = vpop.f32.mrf.mxu0
    %v929 = vadd.f32 %v735, %v928
    %v930 = vpop.f32.mrf.mxu0
    %v931 = vpop.f32.mrf.mxu0
    %v932 = vadd.f32 %v735, %v931
    %v933 = vpop.f32.mrf.mxu0
    %934 = vmatprep.mubr.bf16.mxu0 0
    %935 = vmatmul.mubr.bf16.gmra.mxu0 %v790
    %v936 = vpop.f32.mrf.mxu0
    %v937 = vadd.f32 %v735, %v936
    %v938 = vpop.f32.mrf.mxu0
    %v939 = vpop.f32.mrf.mxu0
    %v940 = vadd.f32 %v735, %v939
    %v941 = vpop.f32.mrf.mxu0
    %942 = vmatprep.mubr.bf16.mxu0 0
    %943 = vmatmul.mubr.bf16.gmra.mxu0 %v793
    %v944 = vpop.f32.mrf.mxu0
    %v945 = vadd.f32 %v735, %v944
    %v946 = vpop.f32.mrf.mxu0
    %v947 = vpop.f32.mrf.mxu0
    %v948 = vadd.f32 %v735, %v947
    %v949 = vpop.f32.mrf.mxu0
    %950 = vmatprep.mubr.bf16.mxu0 0
    %951 = vmatmul.mubr.bf16.gmra.mxu0 %v796
    %v952 = vpop.f32.mrf.mxu0
    %v953 = vadd.f32 %v735, %v952
    %v954 = vpop.f32.mrf.mxu0
    %v955 = vpop.f32.mrf.mxu0
    %v956 = vadd.f32 %v735, %v955
    %v957 = vpop.f32.mrf.mxu0
    %958 = vdwg.mxu0
    %v959 = vmax.f32 %v833, 0.0
    %v960 = vmax.f32 %v836, 0.0
    %v961 = vmax.f32 %v841, 0.0
    %v962 = vmax.f32 %v844, 0.0
    %v963 = vmax.f32 %v849, 0.0
    %v964 = vmax.f32 %v852, 0.0
    %v965 = vmax.f32 %v857, 0.0
    %v966 = vmax.f32 %v860, 0.0
    %v967 = vmax.f32 %v865, 0.0
    %v968 = vmax.f32 %v868, 0.0
    %v969 = vmax.f32 %v873, 0.0
    %v970 = vmax.f32 %v876, 0.0
    %v971 = vmax.f32 %v881, 0.0
    %v972 = vmax.f32 %v884, 0.0
    %v973 = vmax.f32 %v889, 0.0
    %v974 = vmax.f32 %v892, 0.0
    %v975 = vmax.f32 %v897, 0.0
    %v976 = vmax.f32 %v900, 0.0
    %v977 = vmax.f32 %v905, 0.0
    %v978 = vmax.f32 %v908, 0.0
    %v979 = vmax.f32 %v913, 0.0
    %v980 = vmax.f32 %v916, 0.0
    %v981 = vmax.f32 %v921, 0.0
    %v982 = vmax.f32 %v924, 0.0
    %v983 = vmax.f32 %v929, 0.0
    %v984 = vmax.f32 %v932, 0.0
    %v985 = vmax.f32 %v937, 0.0
    %v986 = vmax.f32 %v940, 0.0
    %v987 = vmax.f32 %v945, 0.0
    %v988 = vmax.f32 %v948, 0.0
    %v989 = vmax.f32 %v953, 0.0
    %v990 = vmax.f32 %v956, 0.0
    %s991 = smul.u32 0, 256
    %s992 = scalar_lea.vmem [#allocation2], %s991
    %993 = vst [vmem:[%s992] sm:$0xff] %v959
    %994 = vst [vmem:[%s992 + $0x8] sm:$0xff] %v960
    %995 = vst [vmem:[%s992 + $0x10] sm:$0xff] %v961
    %996 = vst [vmem:[%s992 + $0x18] sm:$0xff] %v962
    %997 = vst [vmem:[%s992 + $0x20] sm:$0xff] %v963
    %998 = vst [vmem:[%s992 + $0x28] sm:$0xff] %v964
    %999 = vst [vmem:[%s992 + $0x30] sm:$0xff] %v965
    %1000 = vst [vmem:[%s992 + $0x38] sm:$0xff] %v966
    %1001 = vst [vmem:[%s992 + $0x40] sm:$0xff] %v967
    %1002 = vst [vmem:[%s992 + $0x48] sm:$0xff] %v968
    %1003 = vst [vmem:[%s992 + $0x50] sm:$0xff] %v969
    %1004 = vst [vmem:[%s992 + $0x58] sm:$0xff] %v970
    %1005 = vst [vmem:[%s992 + $0x60] sm:$0xff] %v971
    %1006 = vst [vmem:[%s992 + $0x68] sm:$0xff] %v972
    %1007 = vst [vmem:[%s992 + $0x70] sm:$0xff] %v973
    %1008 = vst [vmem:[%s992 + $0x78] sm:$0xff] %v974
    %1009 = vst [vmem:[%s992 + $0x80] sm:$0xff] %v975
    %1010 = vst [vmem:[%s992 + $0x88] sm:$0xff] %v976
    %1011 = vst [vmem:[%s992 + $0x90] sm:$0xff] %v977
    %1012 = vst [vmem:[%s992 + $0x98] sm:$0xff] %v978
    %1013 = vst [vmem:[%s992 + $0xa0] sm:$0xff] %v979
    %1014 = vst [vmem:[%s992 + $0xa8] sm:$0xff] %v980
    %1015 = vst [vmem:[%s992 + $0xb0] sm:$0xff] %v981
    %1016 = vst [vmem:[%s992 + $0xb8] sm:$0xff] %v982
    %1017 = vst [vmem:[%s992 + $0xc0] sm:$0xff] %v983
    %1018 = vst [vmem:[%s992 + $0xc8] sm:$0xff] %v984
    %1019 = vst [vmem:[%s992 + $0xd0] sm:$0xff] %v985
    %1020 = vst [vmem:[%s992 + $0xd8] sm:$0xff] %v986
    %1021 = vst [vmem:[%s992 + $0xe0] sm:$0xff] %v987
    %1022 = vst [vmem:[%s992 + $0xe8] sm:$0xff] %v988
    %1023 = vst [vmem:[%s992 + $0xf0] sm:$0xff] %v989
    %1024 = vst [vmem:[%s992 + $0xf8] sm:$0xff] %v990
    %p1025 = scmp.eq.s32.totalorder 0, 0
    // Predicated region
    $region30: #{tpu_custom_call.1} parent=1 // pred_check
      %p1026 = pneg %p1025
    $region31: #{tpu_custom_call.1} parent=1 // pred_check_branch
      %1028 = sbr.rel (%p1026) target = $region33
    $region32: #{tpu_custom_call.1} parent=1 // pred_region
      %v1029 = vld [vmem:[#allocation2] sm:$0xff]
      %v1030 = vld [vmem:[#allocation2 + $0x8] sm:$0xff]
      %v1031 = vld [vmem:[#allocation2 + $0x10] sm:$0xff]
      %v1032 = vld [vmem:[#allocation2 + $0x18] sm:$0xff]
      %v1033 = vld [vmem:[#allocation2 + $0x20] sm:$0xff]
      %v1034 = vld [vmem:[#allocation2 + $0x28] sm:$0xff]
      %v1035 = vld [vmem:[#allocation2 + $0x30] sm:$0xff]
      %v1036 = vld [vmem:[#allocation2 + $0x38] sm:$0xff]
      %v1037 = vld [vmem:[#allocation2 + $0x40] sm:$0xff]
      %v1038 = vld [vmem:[#allocation2 + $0x48] sm:$0xff]
      %v1039 = vld [vmem:[#allocation2 + $0x50] sm:$0xff]
      %v1040 = vld [vmem:[#allocation2 + $0x58] sm:$0xff]
      %v1041 = vld [vmem:[#allocation2 + $0x60] sm:$0xff]
      %v1042 = vld [vmem:[#allocation2 + $0x68] sm:$0xff]
      %v1043 = vld [vmem:[#allocation2 + $0x70] sm:$0xff]
      %v1044 = vld [vmem:[#allocation2 + $0x78] sm:$0xff]
      %v1045 = vld [vmem:[#allocation2 + $0x80] sm:$0xff]
      %v1046 = vld [vmem:[#allocation2 + $0x88] sm:$0xff]
      %v1047 = vld [vmem:[#allocation2 + $0x90] sm:$0xff]
      %v1048 = vld [vmem:[#allocation2 + $0x98] sm:$0xff]
      %v1049 = vld [vmem:[#allocation2 + $0xa0] sm:$0xff]
      %v1050 = vld [vmem:[#allocation2 + $0xa8] sm:$0xff]
      %v1051 = vld [vmem:[#allocation2 + $0xb0] sm:$0xff]
      %v1052 = vld [vmem:[#allocation2 + $0xb8] sm:$0xff]
      %v1053 = vld [vmem:[#allocation2 + $0xc0] sm:$0xff]
      %v1054 = vld [vmem:[#allocation2 + $0xc8] sm:$0xff]
      %v1055 = vld [vmem:[#allocation2 + $0xd0] sm:$0xff]
      %v1056 = vld [vmem:[#allocation2 + $0xd8] sm:$0xff]
      %v1057 = vld [vmem:[#allocation2 + $0xe0] sm:$0xff]
      %v1058 = vld [vmem:[#allocation2 + $0xe8] sm:$0xff]
      %v1059 = vld [vmem:[#allocation2 + $0xf0] sm:$0xff]
      %v1060 = vld [vmem:[#allocation2 + $0xf8] sm:$0xff]
      %v1061 = vadd.f32 %v1029, %v1030
      %v1062 = vadd.f32 %v1061, %v1031
      %v1063 = vadd.f32 %v1062, %v1032
      %v1064 = vadd.f32 %v1063, %v1033
      %v1065 = vadd.f32 %v1064, %v1034
      %v1066 = vadd.f32 %v1065, %v1035
      %v1067 = vadd.f32 %v1066, %v1036
      %v1068 = vadd.f32 %v1067, %v1037
      %v1069 = vadd.f32 %v1068, %v1038
      %v1070 = vadd.f32 %v1069, %v1039
      %v1071 = vadd.f32 %v1070, %v1040
      %v1072 = vadd.f32 %v1071, %v1041
      %v1073 = vadd.f32 %v1072, %v1042
      %v1074 = vadd.f32 %v1073, %v1043
      %v1075 = vadd.f32 %v1074, %v1044
      %v1076 = vadd.f32 %v1075, %v1045
      %v1077 = vadd.f32 %v1076, %v1046
      %v1078 = vadd.f32 %v1077, %v1047
      %v1079 = vadd.f32 %v1078, %v1048
      %v1080 = vadd.f32 %v1079, %v1049
      %v1081 = vadd.f32 %v1080, %v1050
      %v1082 = vadd.f32 %v1081, %v1051
      %v1083 = vadd.f32 %v1082, %v1052
      %v1084 = vadd.f32 %v1083, %v1053
      %v1085 = vadd.f32 %v1084, %v1054
      %v1086 = vadd.f32 %v1085, %v1055
      %v1087 = vadd.f32 %v1086, %v1056
      %v1088 = vadd.f32 %v1087, %v1057
      %v1089 = vadd.f32 %v1088, %v1058
      %v1090 = vadd.f32 %v1089, %v1059
      %v1091 = vadd.f32 %v1090, %v1060
      %v1092 = vrot.slane %v1091, 4
      %v1093 = vadd.f32 %v1091, %v1092
      %v1094 = vrot.slane %v1093, 2
      %v1095 = vadd.f32 %v1093, %v1094
      %v1096 = vrot.slane %v1095, 1
      %v1097 = vadd.f32 %v1095, %v1096
      %v1098 = vmul.f32 %v1097, 0.00390625
      %v1099 = vsub.f32 %v1029, %v1098
      %v1100 = vsub.f32 %v1030, %v1098
      %v1101 = vsub.f32 %v1031, %v1098
      %v1102 = vsub.f32 %v1032, %v1098
      %v1103 = vsub.f32 %v1033, %v1098
      %v1104 = vsub.f32 %v1034, %v1098
      %v1105 = vsub.f32 %v1035, %v1098
      %v1106 = vsub.f32 %v1036, %v1098
      %v1107 = vsub.f32 %v1037, %v1098
      %v1108 = vsub.f32 %v1038, %v1098
      %v1109 = vsub.f32 %v1039, %v1098
      %v1110 = vsub.f32 %v1040, %v1098
      %v1111 = vsub.f32 %v1041, %v1098
      %v1112 = vsub.f32 %v1042, %v1098
      %v1113 = vsub.f32 %v1043, %v1098
      %v1114 = vsub.f32 %v1044, %v1098
      %v1115 = vsub.f32 %v1045, %v1098
      %v1116 = vsub.f32 %v1046, %v1098
      %v1117 = vsub.f32 %v1047, %v1098
      %v1118 = vsub.f32 %v1048, %v1098
      %v1119 = vsub.f32 %v1049, %v1098
      %v1120 = vsub.f32 %v1050, %v1098
      %v1121 = vsub.f32 %v1051, %v1098
      %v1122 = vsub.f32 %v1052, %v1098
      %v1123 = vsub.f32 %v1053, %v1098
      %v1124 = vsub.f32 %v1054, %v1098
      %v1125 = vsub.f32 %v1055, %v1098
      %v1126 = vsub.f32 %v1056, %v1098
      %v1127 = vsub.f32 %v1057, %v1098
      %v1128 = vsub.f32 %v1058, %v1098
      %v1129 = vsub.f32 %v1059, %v1098
      %v1130 = vsub.f32 %v1060, %v1098
      %v1131 = vmul.f32 %v1099, %v1099
      %v1132 = vmul.f32 %v1100, %v1100
      %v1133 = vmul.f32 %v1101, %v1101
      %v1134 = vmul.f32 %v1102, %v1102
      %v1135 = vmul.f32 %v1103, %v1103
      %v1136 = vmul.f32 %v1104, %v1104
      %v1137 = vmul.f32 %v1105, %v1105
      %v1138 = vmul.f32 %v1106, %v1106
      %v1139 = vmul.f32 %v1107, %v1107
      %v1140 = vmul.f32 %v1108, %v1108
      %v1141 = vmul.f32 %v1109, %v1109
      %v1142 = vmul.f32 %v1110, %v1110
      %v1143 = vmul.f32 %v1111, %v1111
      %v1144 = vmul.f32 %v1112, %v1112
      %v1145 = vmul.f32 %v1113, %v1113
      %v1146 = vmul.f32 %v1114, %v1114
      %v1147 = vmul.f32 %v1115, %v1115
      %v1148 = vmul.f32 %v1116, %v1116
      %v1149 = vmul.f32 %v1117, %v1117
      %v1150 = vmul.f32 %v1118, %v1118
      %v1151 = vmul.f32 %v1119, %v1119
      %v1152 = vmul.f32 %v1120, %v1120
      %v1153 = vmul.f32 %v1121, %v1121
      %v1154 = vmul.f32 %v1122, %v1122
      %v1155 = vmul.f32 %v1123, %v1123
      %v1156 = vmul.f32 %v1124, %v1124
      %v1157 = vmul.f32 %v1125, %v1125
      %v1158 = vmul.f32 %v1126, %v1126
      %v1159 = vmul.f32 %v1127, %v1127
      %v1160 = vmul.f32 %v1128, %v1128
      %v1161 = vmul.f32 %v1129, %v1129
      %v1162 = vmul.f32 %v1130, %v1130
      %v1163 = vadd.f32 %v1131, %v1132
      %v1164 = vadd.f32 %v1163, %v1133
      %v1165 = vadd.f32 %v1164, %v1134
      %v1166 = vadd.f32 %v1165, %v1135
      %v1167 = vadd.f32 %v1166, %v1136
      %v1168 = vadd.f32 %v1167, %v1137
      %v1169 = vadd.f32 %v1168, %v1138
      %v1170 = vadd.f32 %v1169, %v1139
      %v1171 = vadd.f32 %v1170, %v1140
      %v1172 = vadd.f32 %v1171, %v1141
      %v1173 = vadd.f32 %v1172, %v1142
      %v1174 = vadd.f32 %v1173, %v1143
      %v1175 = vadd.f32 %v1174, %v1144
      %v1176 = vadd.f32 %v1175, %v1145
      %v1177 = vadd.f32 %v1176, %v1146
      %v1178 = vadd.f32 %v1177, %v1147
      %v1179 = vadd.f32 %v1178, %v1148
      %v1180 = vadd.f32 %v1179, %v1149
      %v1181 = vadd.f32 %v1180, %v1150
      %v1182 = vadd.f32 %v1181, %v1151
      %v1183 = vadd.f32 %v1182, %v1152
      %v1184 = vadd.f32 %v1183, %v1153
      %v1185 = vadd.f32 %v1184, %v1154
      %v1186 = vadd.f32 %v1185, %v1155
      %v1187 = vadd.f32 %v1186, %v1156
      %v1188 = vadd.f32 %v1187, %v1157
      %v1189 = vadd.f32 %v1188, %v1158
      %v1190 = vadd.f32 %v1189, %v1159
      %v1191 = vadd.f32 %v1190, %v1160
      %v1192 = vadd.f32 %v1191, %v1161
      %v1193 = vadd.f32 %v1192, %v1162
      %v1194 = vrot.slane %v1193, 4
      %v1195 = vadd.f32 %v1193, %v1194
      %v1196 = vrot.slane %v1195, 2
      %v1197 = vadd.f32 %v1195, %v1196
      %v1198 = vrot.slane %v1197, 1
      %v1199 = vadd.f32 %v1197, %v1198
      %v1200 = vmul.f32 %v1199, 0.00390625
      %v1201 = vadd.f32 %v1200, 1e-05
      %v1202 = vrsqrt.pop %v1201
      %v1203 = vmul.f32 %v1099, %v1202
      %v1204 = vmul.f32 %v1100, %v1202
      %v1205 = vmul.f32 %v1101, %v1202
      %v1206 = vmul.f32 %v1102, %v1202
      %v1207 = vmul.f32 %v1103, %v1202
      %v1208 = vmul.f32 %v1104, %v1202
      %v1209 = vmul.f32 %v1105, %v1202
      %v1210 = vmul.f32 %v1106, %v1202
      %v1211 = vmul.f32 %v1107, %v1202
      %v1212 = vmul.f32 %v1108, %v1202
      %v1213 = vmul.f32 %v1109, %v1202
      %v1214 = vmul.f32 %v1110, %v1202
      %v1215 = vmul.f32 %v1111, %v1202
      %v1216 = vmul.f32 %v1112, %v1202
      %v1217 = vmul.f32 %v1113, %v1202
      %v1218 = vmul.f32 %v1114, %v1202
      %v1219 = vmul.f32 %v1115, %v1202
      %v1220 = vmul.f32 %v1116, %v1202
      %v1221 = vmul.f32 %v1117, %v1202
      %v1222 = vmul.f32 %v1118, %v1202
      %v1223 = vmul.f32 %v1119, %v1202
      %v1224 = vmul.f32 %v1120, %v1202
      %v1225 = vmul.f32 %v1121, %v1202
      %v1226 = vmul.f32 %v1122, %v1202
      %v1227 = vmul.f32 %v1123, %v1202
      %v1228 = vmul.f32 %v1124, %v1202
      %v1229 = vmul.f32 %v1125, %v1202
      %v1230 = vmul.f32 %v1126, %v1202
      %v1231 = vmul.f32 %v1127, %v1202
      %v1232 = vmul.f32 %v1128, %v1202
      %v1233 = vmul.f32 %v1129, %v1202
      %v1234 = vmul.f32 %v1130, %v1202
      %1235 = vst [vmem:[#allocation2] sm:$0xff] %v1203
      %1236 = vst [vmem:[#allocation2 + $0x8] sm:$0xff] %v1204
      %1237 = vst [vmem:[#allocation2 + $0x10] sm:$0xff] %v1205
      %1238 = vst [vmem:[#allocation2 + $0x18] sm:$0xff] %v1206
      %1239 = vst [vmem:[#allocation2 + $0x20] sm:$0xff] %v1207
      %1240 = vst [vmem:[#allocation2 + $0x28] sm:$0xff] %v1208
      %1241 = vst [vmem:[#allocation2 + $0x30] sm:$0xff] %v1209
      %1242 = vst [vmem:[#allocation2 + $0x38] sm:$0xff] %v1210
      %1243 = vst [vmem:[#allocation2 + $0x40] sm:$0xff] %v1211
      %1244 = vst [vmem:[#allocation2 + $0x48] sm:$0xff] %v1212
      %1245 = vst [vmem:[#allocation2 + $0x50] sm:$0xff] %v1213
      %1246 = vst [vmem:[#allocation2 + $0x58] sm:$0xff] %v1214
      %1247 = vst [vmem:[#allocation2 + $0x60] sm:$0xff] %v1215
      %1248 = vst [vmem:[#allocation2 + $0x68] sm:$0xff] %v1216
      %1249 = vst [vmem:[#allocation2 + $0x70] sm:$0xff] %v1217
      %1250 = vst [vmem:[#allocation2 + $0x78] sm:$0xff] %v1218
      %1251 = vst [vmem:[#allocation2 + $0x80] sm:$0xff] %v1219
      %1252 = vst [vmem:[#allocation2 + $0x88] sm:$0xff] %v1220
      %1253 = vst [vmem:[#allocation2 + $0x90] sm:$0xff] %v1221
      %1254 = vst [vmem:[#allocation2 + $0x98] sm:$0xff] %v1222
      %1255 = vst [vmem:[#allocation2 + $0xa0] sm:$0xff] %v1223
      %1256 = vst [vmem:[#allocation2 + $0xa8] sm:$0xff] %v1224
      %1257 = vst [vmem:[#allocation2 + $0xb0] sm:$0xff] %v1225
      %1258 = vst [vmem:[#allocation2 + $0xb8] sm:$0xff] %v1226
      %1259 = vst [vmem:[#allocation2 + $0xc0] sm:$0xff] %v1227
      %1260 = vst [vmem:[#allocation2 + $0xc8] sm:$0xff] %v1228
      %1261 = vst [vmem:[#allocation2 + $0xd0] sm:$0xff] %v1229
      %1262 = vst [vmem:[#allocation2 + $0xd8] sm:$0xff] %v1230
      %1263 = vst [vmem:[#allocation2 + $0xe0] sm:$0xff] %v1231
      %1264 = vst [vmem:[#allocation2 + $0xe8] sm:$0xff] %v1232
      %1265 = vst [vmem:[#allocation2 + $0xf0] sm:$0xff] %v1233
      %1266 = vst [vmem:[#allocation2 + $0xf8] sm:$0xff] %v1234
    $region33: #{tpu_custom_call.1} parent=1 // pred_fallthru
      _
    // Predicated region
    $region34: #{tpu_custom_call.1} parent=1 // pred_check
      _
    $region35: #{tpu_custom_call.1} parent=1 // pred_check_branch
      %1268 = sbr.rel (0) target = $region37
    $region36: #{tpu_custom_call.1} parent=1 // pred_region
      %s1270 = ssub.s32 4096, 4096
      %1271 = vsyncadd [#allocation3], %s1270
      %s1272 = sshll.u32 [#allocation2], 4
      %s1273 = int_to_ptr.vmem [resolvable:$true] %s1272
      %1278 = dma.vmem_to_hbm [thread:$0]  %s1273, 4096, %s7, [#allocation3], 128, 128, 8
    $region37: #{tpu_custom_call.1} parent=1 // pred_fallthru
      _
    // Predicated region
    $region38: #{tpu_custom_call.1} parent=1 // pred_check
      _
    $region39: #{tpu_custom_call.1} parent=1 // pred_check_branch
      %1280 = sbr.rel (0) target = $region41
    $region40: #{tpu_custom_call.1} parent=1 // pred_region
      %1281 = dma.done [#allocation3], 4096
    $region41: #{tpu_custom_call.1} parent=1 // pred_fallthru
      _
    %1282 = vsyncpa [#allocation3], 1

</llo_original>
